<compile_context>
chip_gen: v7x
topology: tpu7x:2x2x1
jax: 0.10.0
libtpu: 0.0.40
codegen_flags: <defaults>
</compile_context>

<pallas_src>
import jax
import jax.numpy as jnp
from jax.experimental import pallas as pl
from jax.experimental.pallas import tpu as pltpu


def _round_up(x, m):
    return ((x + m - 1) // m) * m


def _tpu_budgets():
    """Generation-aware (buffer_budget, vmem_limit, n_tensorcores)."""
    vmem_cap = 64 * 1024 * 1024      # conservative fallback (v7x per-TC VMEM)
    n_cores = 1
    try:
        info = pltpu.get_tpu_info()
        cap = getattr(info, "vmem_capacity_bytes", None)
        if cap:
            vmem_cap = int(cap)
        for name in ("num_cores", "core_count", "num_tensorcores",
                     "tensorcore_count"):
            val = getattr(info, name, None)
            if isinstance(val, int) and val > 0:
                n_cores = val
                break
    except Exception:
        pass
    buffer_budget = int(vmem_cap * 0.60)   # pipeline buffers (double-buffered)
    vmem_limit = int(vmem_cap * 0.75)      # explicit scoped-VMEM limit
    return buffer_budget, vmem_limit, n_cores


def _choose_m_tile(BT):
    """M tile: full BT when small, else a 128/256/512 divisor (bf16-sublane ok)."""
    if BT <= 512:
        return BT
    for tm in (512, 256, 128, 64, 32, 16):
        if BT % tm == 0:
            return tm
    return BT


def _choose_vocab_tile(V, E, tm, budget_bytes, n_cores):
    """Largest vocab tile (multiple of 256) fitting the VMEM pipeline budget.

    Only prefers >= 2 tiles when the chip has >= 2 TensorCores; on 1-TC chips
    extra grid steps on a memory-bound problem are pure overhead."""
    if V <= 256:
        return V                          # single full-width tile
    step = 256                            # matches v6e/v7x 256-wide MXU
    v_cap = _round_up(V, step)

    x_bytes = 2 * tm * E * 2              # double-buffered bf16 activation tile

    def fits(t):
        w_bytes = 2 * E * t * 2           # double-buffered bf16 weight tile
        o_bytes = 2 * tm * t * 2          # double-buffered bf16 logits tile
        return x_bytes + w_bytes + o_bytes <= budget_bytes

    cands = [t for t in range(step, v_cap + 1, step) if fits(t)]
    if not cands:
        return step
    if n_cores >= 2:
        multi = [t for t in cands if pl.cdiv(V, t) >= 2]
        if multi:
            return max(multi)
    return max(cands)


# ---------------------------------------------------------------------------
# Pallas kernel: lane-dense head matmul tile; f32 accumulate, bf16 store.
# ---------------------------------------------------------------------------
def head_matmul_kernel(x_ref, w_ref, out_ref):
    # x_ref  : [tm, E]   bf16 activation tile (constant along the vocab axis)
    # w_ref  : [E, tv]   bf16 vocab tile of the transposed head weight
    # out_ref: [tm, tv]  logits tile (bf16 by default; cast on store)
    acc = jnp.dot(x_ref[...], w_ref[...], preferred_element_type=jnp.float32)
    out_ref[...] = acc.astype(out_ref.dtype)


def dummy_gpt_forward(in_idx, params, *, out_dtype=jnp.bfloat16,
                      vocab_tile=None, m_tile=None):
    """DummyGPTModel forward. in_idx: [B, T] int32. Returns [B, T, V] logits."""
    tok_table = params["tok_emb"]      # [V, E]
    pos_table = params["pos_emb"]      # [context_length, E]
    w_out = params["out_head"]         # [V, E]  (torch Linear layout: [out, in])

    B, T = in_idx.shape
    V, E = w_out.shape
    BT = B * T

    # Eval-mode dropout, dummy transformer blocks and dummy final norm are
    # identity and skipped.  Gather + positional add + cast stay in the (jitted)
    # wrapper so XLA fuses them into one op producing the bf16 [BT, E] slab.
    # TODO(synk): fold the token gather into the kernel via
    # PrefetchScalarGridSpec + pl.Element row indexing to remove the [BT, E]
    # HBM round-trip; training-mode dropout is not implemented.
    tok = jnp.take(tok_table, in_idx, axis=0)                       # [B, T, E]
    x_bf16 = (tok + pos_table[None, :T, :]).astype(jnp.bfloat16).reshape(BT, E)
    w_t = w_out.T.astype(jnp.bfloat16)                              # [E, V]

    budget, vmem_limit, n_cores = _tpu_budgets()
    tm = m_tile if m_tile is not None else _choose_m_tile(BT)
    tv = (vocab_tile if vocab_tile is not None
          else _choose_vocab_tile(V, E, tm, budget, n_cores))

    # Pad V to a tile multiple: full-width unmasked stores, no OOB edge block.
    V_pad = _round_up(V, tv)
    if V_pad != V:
        w_t = jnp.pad(w_t, ((0, 0), (0, V_pad - V)))

    n_m = BT // tm
    n_v = V_pad // tv

    grid_spec = pltpu.PrefetchScalarGridSpec(
        num_scalar_prefetch=0,
        grid=(n_m, n_v),
        in_specs=[
            # Activation tile: block index constant along the inner vocab axis,
            # so it is fetched once per M tile (no per-vocab-tile re-DMA).
            pl.BlockSpec((tm, E), lambda i, j: (i, 0)),
            # Head-weight vocab tile.
            # TODO(synk): if a v5e profile shows exposed weight DMA, sweep
            # pipeline_mode=pl.Buffered(3) on this spec.
            pl.BlockSpec((E, tv), lambda i, j: (0, j)),
        ],
        out_specs=pl.BlockSpec((tm, tv), lambda i, j: (i, j)),
    )

    logits_flat = pl.pallas_call(
        head_matmul_kernel,
        out_shape=jax.ShapeDtypeStruct((BT, V_pad), out_dtype),
        grid_spec=grid_spec,
        compiler_params=pltpu.CompilerParams(
            dimension_semantics=("parallel", "parallel"),
            vmem_limit_bytes=vmem_limit,
        ),
    )(x_bf16, w_t)

    if V_pad != V:
        logits_flat = logits_flat[:, :V]
    return logits_flat.reshape(B, T, V)


# ---------------------------------------------------------------------------
# Deterministic parameter init (synthetic; shapes follow DummyGPTModel.__init__)
# ---------------------------------------------------------------------------
def init_params(key, cfg):
    k_tok, k_pos, k_out = jax.random.split(key, 3)
    V, E, C = cfg["vocab_size"], cfg["emb_dim"], cfg["context_length"]
    return {
        "tok_emb": jax.random.normal(k_tok, (V, E), dtype=jnp.float32) * 0.02,
        "pos_emb": jax.random.normal(k_pos, (C, E), dtype=jnp.float32) * 0.02,
        "out_head": jax.random.normal(k_out, (V, E), dtype=jnp.float32) * 0.02,
    }


if __name__ == "__main__":
    # Small config consistent with the module structure (scaled-down GPT cfg).
    cfg = {
        "vocab_size": 512,
        "context_length": 16,
        "emb_dim": 32,
        "n_heads": 4,
        "n_layers": 2,
        "drop_rate": 0.1,   # eval mode -> identity
        "qkv_bias": False,
    }

    key = jax.random.PRNGKey(0)
    k_params, k_idx = jax.random.split(key)
    params = init_params(k_params, cfg)

    B, T = 2, 8
    in_idx = jax.random.randint(k_idx, (B, T), 0, cfg["vocab_size"],
                                dtype=jnp.int32)

    forward = jax.jit(lambda idx: dummy_gpt_forward(idx, params))
    logits = jax.block_until_ready(forward(in_idx))

    # References:
    #   ref_bf16 mirrors the kernel's cast path exactly (bf16 operands, f32
    #   accumulation, bf16 result).  ref_f32 is the original module math.
    tok = jnp.take(params["tok_emb"], in_idx, axis=0)          # [B, T, E]
    x_f32 = tok + params["pos_emb"][None, :T, :]               # [B, T, E]
    x_b = x_f32.astype(jnp.bfloat16).astype(jnp.float32)
    w_b = params["out_head"].T.astype(jnp.bfloat16).astype(jnp.float32)
    ref_bf16 = (x_b @ w_b).astype(jnp.bfloat16).astype(jnp.float32)
    ref_f32 = x_f32 @ params["out_head"].T                     # [B, T, V]

    assert logits.shape == (B, T, cfg["vocab_size"]), logits.shape
    assert logits.dtype == jnp.bfloat16, logits.dtype
    logits_f32 = logits.astype(jnp.float32)
    assert jnp.allclose(logits_f32, ref_bf16, atol=5e-4, rtol=1e-2)
    assert jnp.allclose(logits_f32, ref_f32, atol=2e-3, rtol=5e-2)

    print("KERNEL_OK")
</pallas_src>

<mosaic_0001>
module attributes {stable_mosaic.version = 11 : i64} {
  func.func @head_matmul_kernel(%arg0: i32, %arg1: i32, %arg2: memref<16x32xbf16, #tpu.memory_space<vmem>>, %arg3: memref<32x512xbf16, #tpu.memory_space<vmem>>, %arg4: memref<16x512xbf16, #tpu.memory_space<vmem>>) attributes {dimension_semantics = [#tpu.dimension_semantics<parallel>, #tpu.dimension_semantics<parallel>], iteration_bounds = array<i64: 1, 1>, scalar_prefetch = 0 : i64, scratch_operands = 0 : i64, tpu.core_type = #tpu.core_type<tc>, window_params = [{transform_indices = @transform_0, window_bounds = array<i64: 16, 32>}, {transform_indices = @transform_1, window_bounds = array<i64: 32, 512>}, {transform_indices = @transform_2, window_bounds = array<i64: 16, 512>}]} {
    %c0 = arith.constant 0 : index
    %c0_0 = arith.constant 0 : index
    %0 = vector.load %arg2[%c0, %c0_0] : memref<16x32xbf16, #tpu.memory_space<vmem>>, vector<16x32xbf16>
    %c0_1 = arith.constant 0 : index
    %c0_2 = arith.constant 0 : index
    %1 = vector.load %arg3[%c0_1, %c0_2] : memref<32x512xbf16, #tpu.memory_space<vmem>>, vector<32x512xbf16>
    %cst = arith.constant dense<0.000000e+00> : vector<16x512xf32>
    %2 = tpu.matmul %0, %1, %cst {dimension_numbers = #tpu.dot_dimension_numbers<[1], [0], [0], [1], [0, 0, 1, 1], [], []>} : vector<16x32xbf16>, vector<32x512xbf16>, vector<16x512xf32> -> vector<16x512xf32>
    %3 = arith.truncf %2 : vector<16x512xf32> to vector<16x512xbf16>
    %c0_3 = arith.constant 0 : index
    %c0_4 = arith.constant 0 : index
    %4 = vector.load %arg4[%c0_3, %c0_4] : memref<16x512xbf16, #tpu.memory_space<vmem>>, vector<16x512xbf16>
    tpu.vector_store %arg4[%c0_3, %c0_4], %3 {strides = array<i32>} : memref<16x512xbf16, #tpu.memory_space<vmem>>, vector<16x512xbf16>,
    return
  }
  func.func @transform_0(%arg0: i32, %arg1: i32) -> (i32, i32) {
    %c0_i32 = arith.constant 0 : i32
    %c0_i32_0 = arith.constant 0 : i32
    return %arg0, %c0_i32 : i32, i32
  }
  func.func @transform_1(%arg0: i32, %arg1: i32) -> (i32, i32) {
    %c0_i32 = arith.constant 0 : i32
    %c0_i32_0 = arith.constant 0 : i32
    return %c0_i32, %arg1 : i32, i32
  }
  func.func @transform_2(%arg0: i32, %arg1: i32) -> (i32, i32) {
    %c0_i32 = arith.constant 0 : i32
    return %arg0, %arg1 : i32, i32
  }
}

</mosaic_0001>

<llo_original>
// kernel: _lambda_.1
$region0: #{_lambda_.1}
  #allocation0 [shape = 'u32[]', space=smem, size = 0x4, offset = 0x4, fixed_abs, tag = 'smem constant byte address 0x4 - core index']
  #allocation1 [shape = 'u32[144,128]{1,0:T(1,128)}', space=vmem, size = 0x12000, scoped, tag = 'internal scratch']
  %s0 = inlined_call_operand.vmem [shape: bf16[16,32], index: 0, kind: input, shape index: {}]
  %s1 = inlined_call_operand.vmem [shape: bf16[32,512], index: 1, kind: input, shape index: {}]
  %s2 = inlined_call_operand.hbm [shape: bf16[16,512], index: 2, kind: output, shape index: {}]
  %s3 = sld [smem:[#allocation0]]
  $region18: #{_lambda_.1} parent=0
    _
  %s5 = ssub.s32 1, %s3
  %s6 = scalar_select 0, %s5, %s3
  $region1: #{_lambda_.1} parent=0
    #allocation2 [shape = 'u8[16384]{0}', space=vmem, size = 0x4000, scoped, tag = 'output window, operand 0, single buffered']
    #allocation3 [shape = 's32[1]{0}', space=sflag, size = 0x4, scoped, tag = 'scoped memory for _lambda_.1']
    %7 = vsyncpa [#allocation3], 0
    // Predicated region
    $region2: #{_lambda_.1} parent=1 // pred_check
      _
    $region3: #{_lambda_.1} parent=1 // pred_check_branch
      %9 = sbr.rel (0) target = $region5
    $region4: #{_lambda_.1} parent=1 // pred_region
      _
    $region5: #{_lambda_.1} parent=1 // pred_fallthru
      _
    // Predicated region
    $region6: #{_lambda_.1} parent=1 // pred_check
      _
    $region7: #{_lambda_.1} parent=1 // pred_check_branch
      %11 = sbr.rel (0) target = $region9
    $region8: #{_lambda_.1} parent=1 // pred_region
      _
    $region9: #{_lambda_.1} parent=1 // pred_fallthru
      _
    %v13 = vld [vmem:[%s0] sm:$0xf]
    %v14 = vld [vmem:[%s0 + $0x4] sm:$0xf]
    %v15 = vld [vmem:[%s1] sm:$0xff]
    %v16 = vld [vmem:[%s1 + $0x8] sm:$0xff]
    %v17 = vld [vmem:[%s1 + $0x10] sm:$0xff]
    %v18 = vld [vmem:[%s1 + $0x18] sm:$0xff]
    %v19 = vld [vmem:[%s1 + $0x20] sm:$0xff]
    %v20 = vld [vmem:[%s1 + $0x28] sm:$0xff]
    %v21 = vld [vmem:[%s1 + $0x30] sm:$0xff]
    %v22 = vld [vmem:[%s1 + $0x38] sm:$0xff]
    %v25 = vunpack.c.l.b16 %v13
    %v26 = vunpack.c.l.b16 %v14
    %v27 = vpack.c.b16 %v26, %v25
    %v36 = vunpack.c.l.b16 %v15
    %v37 = vunpack.c.h.b16 %v15
    %v38 = vunpack.c.l.b16 %v16
    %v39 = vunpack.c.h.b16 %v16
    %v40 = vunpack.c.l.b16 %v17
    %v41 = vunpack.c.h.b16 %v17
    %v42 = vunpack.c.l.b16 %v18
    %v43 = vunpack.c.h.b16 %v18
    %v44 = vunpack.c.l.b16 %v19
    %v45 = vunpack.c.h.b16 %v19
    %v46 = vunpack.c.l.b16 %v20
    %v47 = vunpack.c.h.b16 %v20
    %v48 = vunpack.c.l.b16 %v21
    %v49 = vunpack.c.h.b16 %v21
    %v50 = vunpack.c.l.b16 %v22
    %v51 = vunpack.c.h.b16 %v22
    %v52 = vpack.c.b16 %v40, %v36
    %v53 = vpack.c.b16 %v41, %v37
    %v54 = vpack.c.b16 %v42, %v38
    %v55 = vpack.c.b16 %v43, %v39
    %v56 = vpack.c.b16 %v48, %v44
    %v57 = vpack.c.b16 %v49, %v45
    %v58 = vpack.c.b16 %v50, %v46
    %v59 = vpack.c.b16 %v51, %v47
    %vm68 = vcmask 261120
    %v70 = vsel %vm68, %v27, 0
    %72 = vmatprep.subr.bf16.mxu0 %v53
    %73 = vmatpush1.bf16.msra.mxu0 %v52
    %74 = vmatprep.subr.bf16.mxu0 %v57
    %75 = vmatpush1.bf16.msra.mxu0 %v56
    %76 = vmatprep.subr.bf16.mxu0 0
    %77 = vmatpush1.bf16.msra.mxu0 0
    %78 = vmatprep.subr.bf16.mxu0 0
    %79 = vmatpush1.bf16.msra.mxu0 0
    %80 = vmatprep.subr.bf16.mxu0 0
    %81 = vmatpush1.bf16.msra.mxu0 0
    %82 = vmatprep.subr.bf16.mxu0 0
    %83 = vmatpush1.bf16.msra.mxu0 0
    %84 = vmatprep.subr.bf16.mxu0 0
    %85 = vmatpush1.bf16.msra.mxu0 0
    %86 = vmatprep.subr.bf16.mxu0 0
    %87 = vmatpush1.bf16.msra.mxu0 0
    %88 = vmatprep.subr.bf16.mxu0 0
    %89 = vmatpush1.bf16.msra.mxu0 0
    %90 = vmatprep.subr.bf16.mxu0 0
    %91 = vmatpush1.bf16.msra.mxu0 0
    %92 = vmatprep.subr.bf16.mxu0 0
    %93 = vmatpush1.bf16.msra.mxu0 0
    %94 = vmatprep.subr.bf16.mxu0 0
    %95 = vmatpush1.bf16.msra.mxu0 0
    %96 = vmatprep.subr.bf16.mxu0 0
    %97 = vmatpush1.bf16.msra.mxu0 0
    %98 = vmatprep.subr.bf16.mxu0 0
    %99 = vmatpush1.bf16.msra.mxu0 0
    %100 = vmatprep.subr.bf16.mxu0 0
    %101 = vmatpush1.bf16.msra.mxu0 0
    %102 = vmatprep.subr.bf16.mxu0 0
    %103 = vmatpush1.bf16.msra.mxu0 0
    %104 = vmatprep.mubr.bf16.mxu0 0
    %105 = vmatmul.mubr.bf16.gmra.mrb[0].mxu0 %v70
    %v106 = vpop.f32.mrb[0].mxu0
    %v107 = vadd.f32 0.0, %v106
    %v108 = vpop.f32.mrb[0].mxu0
    %v109 = vadd.f32 0.0, %v108
    %v110 = vpop.f32.mrb[0].mxu0
    %v111 = vadd.f32 0.0, %v110
    %v112 = vpop.f32.mrb[0].mxu0
    %v113 = vadd.f32 0.0, %v112
    %114 = vdwg.mxu0
    %115 = vmatprep.subr.bf16.mxu0 %v55
    %116 = vmatpush1.bf16.msra.mxu0 %v54
    %117 = vmatprep.subr.bf16.mxu0 %v59
    %118 = vmatpush1.bf16.msra.mxu0 %v58
    %119 = vmatprep.subr.bf16.mxu0 0
    %120 = vmatpush1.bf16.msra.mxu0 0
    %121 = vmatprep.subr.bf16.mxu0 0
    %122 = vmatpush1.bf16.msra.mxu0 0
    %123 = vmatprep.subr.bf16.mxu0 0
    %124 = vmatpush1.bf16.msra.mxu0 0
    %125 = vmatprep.subr.bf16.mxu0 0
    %126 = vmatpush1.bf16.msra.mxu0 0
    %127 = vmatprep.subr.bf16.mxu0 0
    %128 = vmatpush1.bf16.msra.mxu0 0
    %129 = vmatprep.subr.bf16.mxu0 0
    %130 = vmatpush1.bf16.msra.mxu0 0
    %131 = vmatprep.subr.bf16.mxu0 0
    %132 = vmatpush1.bf16.msra.mxu0 0
    %133 = vmatprep.subr.bf16.mxu0 0
    %134 = vmatpush1.bf16.msra.mxu0 0
    %135 = vmatprep.subr.bf16.mxu0 0
    %136 = vmatpush1.bf16.msra.mxu0 0
    %137 = vmatprep.subr.bf16.mxu0 0
    %138 = vmatpush1.bf16.msra.mxu0 0
    %139 = vmatprep.subr.bf16.mxu0 0
    %140 = vmatpush1.bf16.msra.mxu0 0
    %141 = vmatprep.subr.bf16.mxu0 0
    %142 = vmatpush1.bf16.msra.mxu0 0
    %143 = vmatprep.subr.bf16.mxu0 0
    %144 = vmatpush1.bf16.msra.mxu0 0
    %145 = vmatprep.subr.bf16.mxu0 0
    %146 = vmatpush1.bf16.msra.mxu0 0
    %147 = vmatprep.mubr.bf16.mxu0 0
    %148 = vmatmul.mubr.bf16.gmra.mrb[0].mxu0 %v70
    %v149 = vpop.f32.mrb[0].mxu0
    %v150 = vadd.f32 0.0, %v149
    %v151 = vpop.f32.mrb[0].mxu0
    %v152 = vadd.f32 0.0, %v151
    %v153 = vpop.f32.mrb[0].mxu0
    %v154 = vadd.f32 0.0, %v153
    %v155 = vpop.f32.mrb[0].mxu0
    %v156 = vadd.f32 0.0, %v155
    %157 = vdwg.mxu0
    %v158 = vpack.c.bf16 %v111, %v107
    %v159 = vpack.c.bf16 %v113, %v109
    %v160 = vpack.c.bf16 %v154, %v150
    %v161 = vpack.c.bf16 %v156, %v152
    %v166 = vunpack.c.l.b16 %v158
    %v167 = vunpack.c.l.b16 %v159
    %v168 = vunpack.c.l.b16 %v160
    %v169 = vunpack.c.l.b16 %v161
    %v170 = vunpack.c.h.b16 %v158
    %v171 = vunpack.c.h.b16 %v159
    %v172 = vunpack.c.h.b16 %v160
    %v173 = vunpack.c.h.b16 %v161
    %v174 = vpack.c.b16 %v167, %v166
    %v175 = vpack.c.b16 %v169, %v168
    %v176 = vpack.c.b16 %v171, %v170
    %v177 = vpack.c.b16 %v173, %v172
    %182 = vst [vmem:[#allocation2] sm:$0xff] %v174
    %183 = vst [vmem:[#allocation2 + $0x8] sm:$0xff] %v175
    %184 = vst [vmem:[#allocation2 + $0x10] sm:$0xff] %v176
    %185 = vst [vmem:[#allocation2 + $0x18] sm:$0xff] %v177
    // Predicated region
    $region10: #{_lambda_.1} parent=1 // pred_check
      _
    $region11: #{_lambda_.1} parent=1 // pred_check_branch
      %187 = sbr.rel (0) target = $region13
    $region12: #{_lambda_.1} parent=1 // pred_region
      %s189 = ssub.s32 512, 512
      %190 = vsyncadd [#allocation3], %s189
      %s191 = sshll.u32 [#allocation2], 4
      %s192 = int_to_ptr.vmem [resolvable:$true] %s191
      %197 = dma.vmem_to_hbm [thread:$0]  %s192, 512, %s2, [#allocation3], 256, 256, 16
    $region13: #{_lambda_.1} parent=1 // pred_fallthru
      _
    // Predicated region
    $region14: #{_lambda_.1} parent=1 // pred_check
      _
    $region15: #{_lambda_.1} parent=1 // pred_check_branch
      %199 = sbr.rel (0) target = $region17
    $region16: #{_lambda_.1} parent=1 // pred_region
      %200 = dma.done [#allocation3], 512
    $region17: #{_lambda_.1} parent=1 // pred_fallthru
      _
    %201 = vsyncpa [#allocation3], 1

</llo_original>
